<compile_context>
chip_gen: v7x
topology: tpu7x:2x2x1
jax: 0.10.0
libtpu: 0.0.40
codegen_flags: <defaults>
</compile_context>

<pallas_src>
import math

import jax
import jax.numpy as jnp
from jax.experimental import pallas as pl
from jax.experimental.pallas import tpu as pltpu


def predictnet_kernel(x_ref, h_ref, c_ref, wi_ref, wh_ref, wo_ref, b_ref,
                      pred_ref):
    H = c_ref.shape[1]
    O = wo_ref.shape[1]

    b = b_ref[...]                                    # (1, 3H + O), one tiny load

    # gates = x @ Wi3 + h @ Wh3 + b_gate  -> (B, 3H); o-gate columns pre-trimmed.
    gates = (jnp.dot(x_ref[...], wi_ref[...], preferred_element_type=jnp.float32)
             + jnp.dot(h_ref[...], wh_ref[...], preferred_element_type=jnp.float32)
             + b[:, :3 * H])

    # Full-slab nonlinearities (one EUP pass each over a single padded vreg),
    # then slice the gate blocks.  o-gate / h' intentionally never computed.
    sig = jax.nn.sigmoid(gates)
    tnh = jnp.tanh(gates)
    i_g = sig[:, 0 * H:1 * H]
    f_g = sig[:, 1 * H:2 * H]
    g_g = tnh[:, 2 * H:3 * H]

    c_new = f_g * c_ref[...] + i_g * g_g              # (B, H) == states[1]

    # Linear on the cell state; softmax dropped (argmax is invariant under it).
    logits = (jnp.dot(c_new, wo_ref[...], preferred_element_type=jnp.float32)
              + b[:, 3 * H:3 * H + O])                # (B, O)

    # argmax via max / iota / where / min (first-index tie-break, like torch/jnp).
    col = jax.lax.broadcasted_iota(jnp.int32, logits.shape, 1)
    max_v = jnp.max(logits, axis=1, keepdims=True)
    first = jnp.min(jnp.where(logits == max_v, col, O), axis=1)
    pred_ref[...] = first.astype(jnp.int32)[:, None]


def prepare_params(w_ih, w_hh, b_ih, b_hh, w_mlp, b_mlp):
    """One-time (parameter-load time) layout prep.  Keep OUT of the per-step
    path: transposes weights to MXU-friendly layout, trims the unused o-gate
    columns, and packs both biases into a single buffer."""
    H = w_hh.shape[1]
    wi3 = jnp.transpose(w_ih[:3 * H, :])              # (E, 3H)
    wh3 = jnp.transpose(w_hh[:3 * H, :])              # (H, 3H)
    wo = jnp.transpose(w_mlp)                         # (H, O)
    b_packed = jnp.concatenate([(b_ih + b_hh)[:3 * H], b_mlp])[None, :]  # (1, 3H+O)
    return wi3, wh3, wo, b_packed


@jax.jit
def predict_net_forward(task_embeds, h, c, wi3, wh3, wo, b_packed):
    """Per-step path: exactly one HLO op (the pallas_call).
    task_embeds: (B, E); h, c: (B, H); prepped params from prepare_params()."""
    B, E = task_embeds.shape
    H = h.shape[1]
    O = wo.shape[1]

    vmem = pl.BlockSpec(memory_space=pltpu.MemorySpace.VMEM)
    in_bytes = 4 * (B * E + 2 * B * H + E * 3 * H + H * 3 * H + H * O + 3 * H + O)
    cost = pl.CostEstimate(
        flops=2 * B * E * 3 * H + 2 * B * H * 3 * H + 2 * B * H * O,
        transcendentals=2 * B * 3 * H,
        bytes_accessed=in_bytes + 4 * B,
    )
    return pl.pallas_call(
        predictnet_kernel,
        out_shape=jax.ShapeDtypeStruct((B, 1), jnp.int32),
        in_specs=[vmem] * 7,
        out_specs=vmem,
        cost_estimate=cost,
    )(task_embeds, h, c, wi3, wh3, wo, b_packed)


def xavier_like_init(key, shape):
    """Mimic the module's xavier_init: normal(0, sqrt(2/(fan_in+fan_out)))."""
    fan_in, fan_out = shape[0], shape[1]
    std = math.sqrt(2.0 / (fan_in + fan_out))
    return std * jax.random.normal(key, shape, dtype=jnp.float32)


if __name__ == "__main__":
    # Small shapes consistent with the module.
    B, E, H, O = 2, 32, 32, 16          # batch, embed_size, state_size, out_size

    key = jax.random.PRNGKey(0)
    k_x, k_h, k_c, k_wih, k_whh, k_wmlp = jax.random.split(key, 6)

    task_embeds = jax.random.normal(k_x, (B, E), dtype=jnp.float32)
    h0 = jax.random.normal(k_h, (B, H), dtype=jnp.float32)
    c0 = jax.random.normal(k_c, (B, H), dtype=jnp.float32)

    # Parameters (deterministic, xavier-style); 1-D params are filled with 0,
    # exactly like the module's xavier_init.
    w_ih = xavier_like_init(k_wih, (4 * H, E))        # PyTorch layout (4H, E)
    w_hh = xavier_like_init(k_whh, (4 * H, H))        # PyTorch layout (4H, H)
    b_ih = jnp.zeros((4 * H,), jnp.float32)
    b_hh = jnp.zeros((4 * H,), jnp.float32)
    w_mlp = xavier_like_init(k_wmlp, (O, H))          # PyTorch layout (O, H)
    b_mlp = jnp.zeros((O,), jnp.float32)

    # One-time layout prep at "load time" (NOT in the per-step path).
    params = prepare_params(w_ih, w_hh, b_ih, b_hh, w_mlp, b_mlp)
    params = tuple(jax.block_until_ready(p) for p in params)

    pred = predict_net_forward(task_embeds, h0, c0, *params)
    pred = jax.block_until_ready(pred)[:, 0]          # (B,) int32 predictions

    # Pure-JAX reference (full PyTorch-equivalent math: all 4 gates + softmax).
    gates = task_embeds @ w_ih.T + b_ih + h0 @ w_hh.T + b_hh
    i_g = jax.nn.sigmoid(gates[:, 0 * H:1 * H])
    f_g = jax.nn.sigmoid(gates[:, 1 * H:2 * H])
    g_g = jnp.tanh(gates[:, 2 * H:3 * H])
    c_ref = f_g * c0 + i_g * g_g
    logits_ref = c_ref @ w_mlp.T + b_mlp
    pred_ref = jnp.argmax(jax.nn.softmax(logits_ref, axis=1), axis=1).astype(jnp.int32)

    assert bool(jnp.all(pred == pred_ref)), (pred, pred_ref)
    print("KERNEL_OK")
</pallas_src>

<mosaic_0001>
module attributes {stable_mosaic.version = 11 : i64} {
  func.func @predictnet_kernel(%arg0: memref<2x32xf32, #tpu.memory_space<vmem>>, %arg1: memref<2x32xf32, #tpu.memory_space<vmem>>, %arg2: memref<2x32xf32, #tpu.memory_space<vmem>>, %arg3: memref<32x96xf32, #tpu.memory_space<vmem>>, %arg4: memref<32x96xf32, #tpu.memory_space<vmem>>, %arg5: memref<32x16xf32, #tpu.memory_space<vmem>>, %arg6: memref<1x112xf32, #tpu.memory_space<vmem>>, %arg7: memref<2x1xi32, #tpu.memory_space<vmem>>) attributes {dimension_semantics = [], scalar_prefetch = 0 : i64, scratch_operands = 0 : i64, tpu.core_type = #tpu.core_type<tc>} {
    %c0 = arith.constant 0 : index
    %c0_0 = arith.constant 0 : index
    %0 = vector.load %arg6[%c0, %c0_0] : memref<1x112xf32, #tpu.memory_space<vmem>>, vector<1x112xf32>
    %c0_1 = arith.constant 0 : index
    %c0_2 = arith.constant 0 : index
    %1 = vector.load %arg0[%c0_1, %c0_2] : memref<2x32xf32, #tpu.memory_space<vmem>>, vector<2x32xf32>
    %c0_3 = arith.constant 0 : index
    %c0_4 = arith.constant 0 : index
    %2 = vector.load %arg3[%c0_3, %c0_4] : memref<32x96xf32, #tpu.memory_space<vmem>>, vector<32x96xf32>
    %cst = arith.constant dense<0.000000e+00> : vector<2x96xf32>
    %3 = tpu.matmul %1, %2, %cst {dimension_numbers = #tpu.dot_dimension_numbers<[1], [0], [0], [1], [0, 0, 1, 1], [], []>} : vector<2x32xf32>, vector<32x96xf32>, vector<2x96xf32> -> vector<2x96xf32>
    %c0_5 = arith.constant 0 : index
    %c0_6 = arith.constant 0 : index
    %4 = vector.load %arg1[%c0_5, %c0_6] : memref<2x32xf32, #tpu.memory_space<vmem>>, vector<2x32xf32>
    %c0_7 = arith.constant 0 : index
    %c0_8 = arith.constant 0 : index
    %5 = vector.load %arg4[%c0_7, %c0_8] : memref<32x96xf32, #tpu.memory_space<vmem>>, vector<32x96xf32>
    %cst_9 = arith.constant dense<0.000000e+00> : vector<2x96xf32>
    %6 = tpu.matmul %4, %5, %cst_9 {dimension_numbers = #tpu.dot_dimension_numbers<[1], [0], [0], [1], [0, 0, 1, 1], [], []>} : vector<2x32xf32>, vector<32x96xf32>, vector<2x96xf32> -> vector<2x96xf32>
    %7 = arith.addf %3, %6 : vector<2x96xf32>
    %8 = vector.extract_strided_slice %0 {offsets = [0, 0], sizes = [1, 96], strides = [1, 1]} : vector<1x112xf32> to vector<1x96xf32>
    %9 = vector.broadcast %8 : vector<1x96xf32> to vector<2x96xf32>
    %10 = arith.addf %7, %9 : vector<2x96xf32>
    %11 = arith.negf %10 : vector<2x96xf32>
    %12 = math.exp %11 : vector<2x96xf32>
    %cst_10 = arith.constant 1.000000e+00 : f32
    %13 = vector.broadcast %cst_10 : f32 to vector<2x96xf32>
    %14 = arith.addf %13, %12 : vector<2x96xf32>
    %15 = arith.divf %13, %14 : vector<2x96xf32>
    %16 = math.tanh %10 : vector<2x96xf32>
    %17 = vector.extract_strided_slice %15 {offsets = [0, 0], sizes = [2, 32], strides = [1, 1]} : vector<2x96xf32> to vector<2x32xf32>
    %18 = vector.extract_strided_slice %15 {offsets = [0, 32], sizes = [2, 32], strides = [1, 1]} : vector<2x96xf32> to vector<2x32xf32>
    %19 = vector.extract_strided_slice %16 {offsets = [0, 64], sizes = [2, 32], strides = [1, 1]} : vector<2x96xf32> to vector<2x32xf32>
    %c0_11 = arith.constant 0 : index
    %c0_12 = arith.constant 0 : index
    %20 = vector.load %arg2[%c0_11, %c0_12] : memref<2x32xf32, #tpu.memory_space<vmem>>, vector<2x32xf32>
    %21 = arith.mulf %18, %20 : vector<2x32xf32>
    %22 = arith.mulf %17, %19 : vector<2x32xf32>
    %23 = arith.addf %21, %22 : vector<2x32xf32>
    %c0_13 = arith.constant 0 : index
    %c0_14 = arith.constant 0 : index
    %24 = vector.load %arg5[%c0_13, %c0_14] : memref<32x16xf32, #tpu.memory_space<vmem>>, vector<32x16xf32>
    %cst_15 = arith.constant dense<0.000000e+00> : vector<2x16xf32>
    %25 = tpu.matmul %23, %24, %cst_15 {dimension_numbers = #tpu.dot_dimension_numbers<[1], [0], [0], [1], [0, 0, 1, 1], [], []>} : vector<2x32xf32>, vector<32x16xf32>, vector<2x16xf32> -> vector<2x16xf32>
    %26 = vector.extract_strided_slice %0 {offsets = [0, 96], sizes = [1, 16], strides = [1, 1]} : vector<1x112xf32> to vector<1x16xf32>
    %27 = vector.broadcast %26 : vector<1x16xf32> to vector<2x16xf32>
    %28 = arith.addf %25, %27 : vector<2x16xf32>
    %29 = tpu.iota {dimensions = array<i32: 1>} : vector<2x16xi32>
    %cst_16 = arith.constant dense<0xFF800000> : vector<2xf32>
    %30 = vector.multi_reduction <maximumf>, %28, %cst_16 [1] : vector<2x16xf32> to vector<2xf32>
    %31 = vector.shape_cast %30 : vector<2xf32> to vector<2x1xf32>
    %32 = vector.broadcast %31 : vector<2x1xf32> to vector<2x16xf32>
    %33 = arith.cmpf oeq, %28, %32 : vector<2x16xf32>
    %c16_i32 = arith.constant 16 : i32
    %34 = vector.broadcast %c16_i32 : i32 to vector<2x16xi32>
    %35 = arith.select %33, %29, %34 : vector<2x16xi1>, vector<2x16xi32>
    %cst_17 = arith.constant dense<2147483647> : vector<2xi32>
    %36 = vector.multi_reduction <minsi>, %35, %cst_17 [1] : vector<2x16xi32> to vector<2xi32>
    %37 = vector.shape_cast %36 : vector<2xi32> to vector<2x1xi32>
    %c0_18 = arith.constant 0 : index
    %c0_19 = arith.constant 0 : index
    %38 = vector.load %arg7[%c0_18, %c0_19] : memref<2x1xi32, #tpu.memory_space<vmem>>, vector<2x1xi32>
    tpu.vector_store %arg7[%c0_18, %c0_19], %37 {strides = array<i32>} : memref<2x1xi32, #tpu.memory_space<vmem>>, vector<2x1xi32>,
    return
  }
}

</mosaic_0001>

<llo_original>
// kernel: predict_net_forward.1
$region0: #{predict_net_forward.1}
  #allocation0 [shape = 'u32[]', space=smem, size = 0x4, offset = 0x4, fixed_abs, tag = 'smem constant byte address 0x4 - core index']
  #allocation1 [shape = 'u32[144,128]{1,0:T(1,128)}', space=vmem, size = 0x12000, scoped, tag = 'internal scratch']
  %s0 = inlined_call_operand.vmem [shape: f32[2,32], index: 0, kind: input, shape index: {}]
  %s1 = inlined_call_operand.vmem [shape: f32[2,32], index: 1, kind: input, shape index: {}]
  %s2 = inlined_call_operand.vmem [shape: f32[2,32], index: 2, kind: input, shape index: {}]
  %s3 = inlined_call_operand.vmem [shape: f32[32,96], index: 3, kind: input, shape index: {}]
  %s4 = inlined_call_operand.hbm [shape: f32[32,96], index: 4, kind: input, shape index: {}]
  %s5 = inlined_call_operand.vmem [shape: f32[32,16], index: 5, kind: input, shape index: {}]
  %s6 = inlined_call_operand.vmem [shape: f32[1,112], index: 6, kind: input, shape index: {}]
  %s7 = inlined_call_operand.vmem [shape: s32[2,1], index: 7, kind: output, shape index: {}]
  %s8 = sld [smem:[#allocation0]]
  $region42: #{predict_net_forward.1} parent=0
    _
  %s10 = ssub.s32 1, %s8
  %s11 = scalar_select 0, %s10, %s8
  $region1: #{predict_net_forward.1} parent=0
    #allocation2 [shape = 'u8[16384]{0}', space=vmem, size = 0x4000, scoped, tag = 'input window, operand 4, single buffered']
    #allocation3 [shape = 's32[1]{0}', space=sflag, size = 0x4, scoped, tag = 'scoped memory for predict_net_forward.1']
    %12 = vsyncpa [#allocation3], 0
    // Predicated region
    $region2: #{predict_net_forward.1} parent=1 // pred_check
      _
    $region3: #{predict_net_forward.1} parent=1 // pred_check_branch
      %14 = sbr.rel (0) target = $region5
    $region4: #{predict_net_forward.1} parent=1 // pred_region
      _
    $region5: #{predict_net_forward.1} parent=1 // pred_fallthru
      _
    // Predicated region
    $region6: #{predict_net_forward.1} parent=1 // pred_check
      _
    $region7: #{predict_net_forward.1} parent=1 // pred_check_branch
      %16 = sbr.rel (0) target = $region9
    $region8: #{predict_net_forward.1} parent=1 // pred_region
      _
    $region9: #{predict_net_forward.1} parent=1 // pred_fallthru
      _
    // Predicated region
    $region10: #{predict_net_forward.1} parent=1 // pred_check
      _
    $region11: #{predict_net_forward.1} parent=1 // pred_check_branch
      %18 = sbr.rel (0) target = $region13
    $region12: #{predict_net_forward.1} parent=1 // pred_region
      _
    $region13: #{predict_net_forward.1} parent=1 // pred_fallthru
      _
    // Predicated region
    $region14: #{predict_net_forward.1} parent=1 // pred_check
      _
    $region15: #{predict_net_forward.1} parent=1 // pred_check_branch
      %20 = sbr.rel (0) target = $region17
    $region16: #{predict_net_forward.1} parent=1 // pred_region
      _
    $region17: #{predict_net_forward.1} parent=1 // pred_fallthru
      _
    // Predicated region
    $region18: #{predict_net_forward.1} parent=1 // pred_check
      _
    $region19: #{predict_net_forward.1} parent=1 // pred_check_branch
      %22 = sbr.rel (0) target = $region21
    $region20: #{predict_net_forward.1} parent=1 // pred_region
      %s24 = ssub.s32 512, 512
      %25 = vsyncadd [#allocation3], %s24
      %s26 = sshll.u32 [#allocation2], 4
      %s27 = int_to_ptr.vmem [resolvable:$true] %s26
      %32 = dma.hbm_to_vmem [thread:$0]  %s4, 512, %s27, [#allocation3], 128, 128, 8
    $region21: #{predict_net_forward.1} parent=1 // pred_fallthru
      _
    // Predicated region
    $region22: #{predict_net_forward.1} parent=1 // pred_check
      _
    $region23: #{predict_net_forward.1} parent=1 // pred_check_branch
      %34 = sbr.rel (0) target = $region25
    $region24: #{predict_net_forward.1} parent=1 // pred_region
      _
    $region25: #{predict_net_forward.1} parent=1 // pred_fallthru
      _
    // Predicated region
    $region26: #{predict_net_forward.1} parent=1 // pred_check
      _
    $region27: #{predict_net_forward.1} parent=1 // pred_check_branch
      %36 = sbr.rel (0) target = $region29
    $region28: #{predict_net_forward.1} parent=1 // pred_region
      _
    $region29: #{predict_net_forward.1} parent=1 // pred_fallthru
      _
    // Predicated region
    $region30: #{predict_net_forward.1} parent=1 // pred_check
      _
    $region31: #{predict_net_forward.1} parent=1 // pred_check_branch
      %38 = sbr.rel (0) target = $region33
    $region32: #{predict_net_forward.1} parent=1 // pred_region
      %39 = dma.done [#allocation3], 512
    $region33: #{predict_net_forward.1} parent=1 // pred_fallthru
      _
    %v40 = vld [vmem:[%s6] sm:$0x1]
    %v41 = vld [vmem:[%s0] sm:$0x3]
    %v42 = vld [vmem:[%s3] sm:$0xff]
    %v43 = vld [vmem:[%s3 + $0x8] sm:$0xff]
    %v44 = vld [vmem:[%s3 + $0x10] sm:$0xff]
    %v45 = vld [vmem:[%s3 + $0x18] sm:$0xff]
    %v46 = vld [vmem:[%s1] sm:$0x3]
    %v47 = vld [vmem:[#allocation2] sm:$0xff]
    %v48 = vld [vmem:[#allocation2 + $0x8] sm:$0xff]
    %v49 = vld [vmem:[#allocation2 + $0x10] sm:$0xff]
    %v50 = vld [vmem:[#allocation2 + $0x18] sm:$0xff]
    %vm51 = vcmask 261120
    %v53 = vsel %vm51, %v46, 0
    %55 = vmatprep.subr.mxu0 0.0
    %56 = vmatpush1.msra.mxu0 %v47
    %57 = vmatprep.subr.mxu0 0.0
    %58 = vmatpush1.msra.mxu0 %v48
    %59 = vmatprep.subr.mxu0 0.0
    %60 = vmatpush1.msra.mxu0 %v49
    %61 = vmatprep.subr.mxu0 0.0
    %62 = vmatpush1.msra.mxu0 %v50
    %63 = vmatprep.subr.mxu0 0.0
    %64 = vmatpush1.msra.mxu0 0.0
    %65 = vmatprep.subr.mxu0 0.0
    %66 = vmatpush1.msra.mxu0 0.0
    %67 = vmatprep.subr.mxu0 0.0
    %68 = vmatpush1.msra.mxu0 0.0
    %69 = vmatprep.subr.mxu0 0.0
    %70 = vmatpush1.msra.mxu0 0.0
    %71 = vmatprep.subr.mxu0 0.0
    %72 = vmatpush1.msra.mxu0 0.0
    %73 = vmatprep.subr.mxu0 0.0
    %74 = vmatpush1.msra.mxu0 0.0
    %75 = vmatprep.subr.mxu0 0.0
    %76 = vmatpush1.msra.mxu0 0.0
    %77 = vmatprep.subr.mxu0 0.0
    %78 = vmatpush1.msra.mxu0 0.0
    %79 = vmatprep.subr.mxu0 0.0
    %80 = vmatpush1.msra.mxu0 0.0
    %81 = vmatprep.subr.mxu0 0.0
    %82 = vmatpush1.msra.mxu0 0.0
    %83 = vmatprep.subr.mxu0 0.0
    %84 = vmatpush1.msra.mxu0 0.0
    %85 = vmatprep.subr.mxu0 0.0
    %86 = vmatpush1.msra.mxu0 0.0
    %87 = vmatprep.subr.mxu0 0.0
    %88 = vmatpush1.msra.mxu0 0.0
    %89 = vmatprep.subr.mxu0 0.0
    %90 = vmatpush1.msra.mxu0 0.0
    %91 = vmatprep.subr.mxu0 0.0
    %92 = vmatpush1.msra.mxu0 0.0
    %93 = vmatprep.subr.mxu0 0.0
    %94 = vmatpush1.msra.mxu0 0.0
    %95 = vmatprep.subr.mxu0 0.0
    %96 = vmatpush1.msra.mxu0 0.0
    %97 = vmatprep.subr.mxu0 0.0
    %98 = vmatpush1.msra.mxu0 0.0
    %99 = vmatprep.subr.mxu0 0.0
    %100 = vmatpush1.msra.mxu0 0.0
    %101 = vmatprep.subr.mxu0 0.0
    %102 = vmatpush1.msra.mxu0 0.0
    %103 = vmatprep.subr.mxu0 0.0
    %104 = vmatpush1.msra.mxu0 0.0
    %105 = vmatprep.subr.mxu0 0.0
    %106 = vmatpush1.msra.mxu0 0.0
    %107 = vmatprep.subr.mxu0 0.0
    %108 = vmatpush1.msra.mxu0 0.0
    %109 = vmatprep.subr.mxu0 0.0
    %110 = vmatpush1.msra.mxu0 0.0
    %111 = vmatprep.subr.mxu0 0.0
    %112 = vmatpush1.msra.mxu0 0.0
    %113 = vmatprep.subr.mxu0 0.0
    %114 = vmatpush1.msra.mxu0 0.0
    %115 = vmatprep.subr.mxu0 0.0
    %116 = vmatpush1.msra.mxu0 0.0
    %117 = vmatprep.subr.mxu0 0.0
    %118 = vmatpush1.msra.mxu0 0.0
    %119 = vmatprep.mubr.f32.mxu0 0.0
    %120 = vmatmul.mubr.f32.gmra.mrb[0].mxu0 %v53
    %v121 = vpop.f32.mrb[0].mxu0
    %v122 = vadd.f32 0.0, %v121
    %v123 = vpop.f32.mrb[0].mxu0
    %124 = vdwg.mxu0
    %v126 = vsel %vm51, %v41, 0
    %128 = vmatprep.subr.mxu0 0.0
    %129 = vmatpush1.msra.mxu0 %v42
    %130 = vmatprep.subr.mxu0 0.0
    %131 = vmatpush1.msra.mxu0 %v43
    %132 = vmatprep.subr.mxu0 0.0
    %133 = vmatpush1.msra.mxu0 %v44
    %134 = vmatprep.subr.mxu0 0.0
    %135 = vmatpush1.msra.mxu0 %v45
    %136 = vmatprep.subr.mxu0 0.0
    %137 = vmatpush1.msra.mxu0 0.0
    %138 = vmatprep.subr.mxu0 0.0
    %139 = vmatpush1.msra.mxu0 0.0
    %140 = vmatprep.subr.mxu0 0.0
    %141 = vmatpush1.msra.mxu0 0.0
    %142 = vmatprep.subr.mxu0 0.0
    %143 = vmatpush1.msra.mxu0 0.0
    %144 = vmatprep.subr.mxu0 0.0
    %145 = vmatpush1.msra.mxu0 0.0
    %146 = vmatprep.subr.mxu0 0.0
    %147 = vmatpush1.msra.mxu0 0.0
    %148 = vmatprep.subr.mxu0 0.0
    %149 = vmatpush1.msra.mxu0 0.0
    %150 = vmatprep.subr.mxu0 0.0
    %151 = vmatpush1.msra.mxu0 0.0
    %152 = vmatprep.subr.mxu0 0.0
    %153 = vmatpush1.msra.mxu0 0.0
    %154 = vmatprep.subr.mxu0 0.0
    %155 = vmatpush1.msra.mxu0 0.0
    %156 = vmatprep.subr.mxu0 0.0
    %157 = vmatpush1.msra.mxu0 0.0
    %158 = vmatprep.subr.mxu0 0.0
    %159 = vmatpush1.msra.mxu0 0.0
    %160 = vmatprep.subr.mxu0 0.0
    %161 = vmatpush1.msra.mxu0 0.0
    %162 = vmatprep.subr.mxu0 0.0
    %163 = vmatpush1.msra.mxu0 0.0
    %164 = vmatprep.subr.mxu0 0.0
    %165 = vmatpush1.msra.mxu0 0.0
    %166 = vmatprep.subr.mxu0 0.0
    %167 = vmatpush1.msra.mxu0 0.0
    %168 = vmatprep.subr.mxu0 0.0
    %169 = vmatpush1.msra.mxu0 0.0
    %170 = vmatprep.subr.mxu0 0.0
    %171 = vmatpush1.msra.mxu0 0.0
    %172 = vmatprep.subr.mxu0 0.0
    %173 = vmatpush1.msra.mxu0 0.0
    %174 = vmatprep.subr.mxu0 0.0
    %175 = vmatpush1.msra.mxu0 0.0
    %176 = vmatprep.subr.mxu0 0.0
    %177 = vmatpush1.msra.mxu0 0.0
    %178 = vmatprep.subr.mxu0 0.0
    %179 = vmatpush1.msra.mxu0 0.0
    %180 = vmatprep.subr.mxu0 0.0
    %181 = vmatpush1.msra.mxu0 0.0
    %182 = vmatprep.subr.mxu0 0.0
    %183 = vmatpush1.msra.mxu0 0.0
    %184 = vmatprep.subr.mxu0 0.0
    %185 = vmatpush1.msra.mxu0 0.0
    %186 = vmatprep.subr.mxu0 0.0
    %187 = vmatpush1.msra.mxu0 0.0
    %188 = vmatprep.subr.mxu0 0.0
    %189 = vmatpush1.msra.mxu0 0.0
    %190 = vmatprep.subr.mxu0 0.0
    %191 = vmatpush1.msra.mxu0 0.0
    %192 = vmatprep.mubr.f32.mxu0 0.0
    %193 = vmatmul.mubr.f32.gmra.mrb[0].mxu0 %v126
    %v194 = vpop.f32.mrb[0].mxu0
    %v195 = vadd.f32 %v122, %v194
    %v196 = vpop.f32.mrb[0].mxu0
    %197 = vdwg.mxu0
    %v199 = vlaneseq
    %v200 = vshrl.u32 %v199, 7
    %v201 = vsub.s32 0, %v200
    %v202 = vrot.slane %v40, %v201
    %v204 = vadd.f32 %v195, %v202
    %v205 = vxor.u32 %v204, 2147483648
    %v206 = vmul.f32 %v205, 1.442695
    %v207 = vpow.pop %v206
    %v208 = vadd.f32 %v207, 1.0
    %v209 = vrcp.pop %v208
    %v210 = vmul.f32 1.0, %v209
    %v211 = vtanh.pop %v204
    %v212 = vld [vmem:[%s2] sm:$0x3]
    %214 = vrot.lane.b32.xlu0 %v212, 32
    %v215 = vpop.permute.xlu0 %214
    %v217 = vmul.f32 %v210, %v215
    %219 = vrot.lane.b32.xlu0 %v211, 64
    %v220 = vpop.permute.xlu0 %219
    %v222 = vmul.f32 %v210, %v220
    %224 = vrot.lane.b32.xlu0 %v222, 32
    %v225 = vpop.permute.xlu0 %224
    %v227 = vadd.f32 %v217, %v225
    %v228 = vld [vmem:[%s5] sm:$0xff]
    %v229 = vld [vmem:[%s5 + $0x8] sm:$0xff]
    %v230 = vld [vmem:[%s5 + $0x10] sm:$0xff]
    %v231 = vld [vmem:[%s5 + $0x18] sm:$0xff]
    %233 = vrot.lane.b32.xlu0 %v227, 96
    %v234 = vpop.permute.xlu0 %233
    %235 = vrot.lane.b32.xlu0 %v202, 32
    %v236 = vpop.permute.xlu0 %235
    %v238 = vsel %vm51, %v234, 0
    %240 = vmatprep.subr.mxu0 0.0
    %241 = vmatpush1.msra.mxu0 %v228
    %242 = vmatprep.subr.mxu0 0.0
    %243 = vmatpush1.msra.mxu0 %v229
    %244 = vmatprep.subr.mxu0 0.0
    %245 = vmatpush1.msra.mxu0 %v230
    %246 = vmatprep.subr.mxu0 0.0
    %247 = vmatpush1.msra.mxu0 %v231
    %248 = vmatprep.subr.mxu0 0.0
    %249 = vmatpush1.msra.mxu0 0.0
    %250 = vmatprep.subr.mxu0 0.0
    %251 = vmatpush1.msra.mxu0 0.0
    %252 = vmatprep.subr.mxu0 0.0
    %253 = vmatpush1.msra.mxu0 0.0
    %254 = vmatprep.subr.mxu0 0.0
    %255 = vmatpush1.msra.mxu0 0.0
    %256 = vmatprep.subr.mxu0 0.0
    %257 = vmatpush1.msra.mxu0 0.0
    %258 = vmatprep.subr.mxu0 0.0
    %259 = vmatpush1.msra.mxu0 0.0
    %260 = vmatprep.subr.mxu0 0.0
    %261 = vmatpush1.msra.mxu0 0.0
    %262 = vmatprep.subr.mxu0 0.0
    %263 = vmatpush1.msra.mxu0 0.0
    %264 = vmatprep.subr.mxu0 0.0
    %265 = vmatpush1.msra.mxu0 0.0
    %266 = vmatprep.subr.mxu0 0.0
    %267 = vmatpush1.msra.mxu0 0.0
    %268 = vmatprep.subr.mxu0 0.0
    %269 = vmatpush1.msra.mxu0 0.0
    %270 = vmatprep.subr.mxu0 0.0
    %271 = vmatpush1.msra.mxu0 0.0
    %272 = vmatprep.subr.mxu0 0.0
    %273 = vmatpush1.msra.mxu0 0.0
    %274 = vmatprep.subr.mxu0 0.0
    %275 = vmatpush1.msra.mxu0 0.0
    %276 = vmatprep.subr.mxu0 0.0
    %277 = vmatpush1.msra.mxu0 0.0
    %278 = vmatprep.subr.mxu0 0.0
    %279 = vmatpush1.msra.mxu0 0.0
    %280 = vmatprep.subr.mxu0 0.0
    %281 = vmatpush1.msra.mxu0 0.0
    %282 = vmatprep.subr.mxu0 0.0
    %283 = vmatpush1.msra.mxu0 0.0
    %284 = vmatprep.subr.mxu0 0.0
    %285 = vmatpush1.msra.mxu0 0.0
    %286 = vmatprep.subr.mxu0 0.0
    %287 = vmatpush1.msra.mxu0 0.0
    %288 = vmatprep.subr.mxu0 0.0
    %289 = vmatpush1.msra.mxu0 0.0
    %290 = vmatprep.subr.mxu0 0.0
    %291 = vmatpush1.msra.mxu0 0.0
    %292 = vmatprep.subr.mxu0 0.0
    %293 = vmatpush1.msra.mxu0 0.0
    %294 = vmatprep.subr.mxu0 0.0
    %295 = vmatpush1.msra.mxu0 0.0
    %296 = vmatprep.subr.mxu0 0.0
    %297 = vmatpush1.msra.mxu0 0.0
    %298 = vmatprep.subr.mxu0 0.0
    %299 = vmatpush1.msra.mxu0 0.0
    %300 = vmatprep.subr.mxu0 0.0
    %301 = vmatpush1.msra.mxu0 0.0
    %302 = vmatprep.subr.mxu0 0.0
    %303 = vmatpush1.msra.mxu0 0.0
    %304 = vmatprep.mubr.f32.mxu0 0.0
    %305 = vmatmul.mubr.f32.gmra.mrb[0].mxu0 %v238
    %v306 = vpop.f32.mrb[0].mxu0
    %v307 = vadd.f32 %v236, %v306
    %v308 = vpop.f32.mrb[0].mxu0
    %309 = vdwg.mxu0
    %v310 = vlaneseq
    %v311 = vand.u32 %v310, 127
    %vm312 = vcmask 123904
    %v313 = vsel %vm312, %v307, -inf
    %314 = vmax.xlane.f32.xlu0 %v313
    %v315 = vpop.xlane.xlu0 %314
    %vm316 = vcmp.eq.f32.partialorder %v307, %v315
    %v317 = vsel %vm316, %v311, 16
    %v318 = vsel %vm312, %v317, 2147483647
    %v319 = vand.u32 %v318, 65535
    %v320 = vshra.s32 %v318, 16
    %v321 = vcvt.s32.f32 %v319
    %v322 = vcvt.s32.f32 %v320
    %323 = vmin.xlane.f32.xlu0 %v322
    %v324 = vpop.xlane.xlu0 %323
    %vm325 = vcmp.eq.f32.partialorder %v322, %v324
    %v326 = vsel %vm325, %v321, inf
    %327 = vmin.xlane.f32.xlu0 %v326
    %v328 = vpop.xlane.xlu0 %327
    %v329 = vcvt.f32.s32 %v328
    %v330 = vcvt.f32.s32 %v324
    %v331 = vshll.u32 %v330, 16
    %v332 = vadd.s32 %v331, %v329
    %vm333 = vcmask 1024
    %334 = vst.msk [vmem:[%s7] sm:$0x3] %vm333, %v332
    // Predicated region
    $region34: #{predict_net_forward.1} parent=1 // pred_check
      _
    $region35: #{predict_net_forward.1} parent=1 // pred_check_branch
      %336 = sbr.rel (0) target = $region37
    $region36: #{predict_net_forward.1} parent=1 // pred_region
      _
    $region37: #{predict_net_forward.1} parent=1 // pred_fallthru
      _
    // Predicated region
    $region38: #{predict_net_forward.1} parent=1 // pred_check
      _
    $region39: #{predict_net_forward.1} parent=1 // pred_check_branch
      %338 = sbr.rel (0) target = $region41
    $region40: #{predict_net_forward.1} parent=1 // pred_region
      _
    $region41: #{predict_net_forward.1} parent=1 // pred_fallthru
      _
    %339 = vsyncpa [#allocation3], 1

</llo_original>
